<compile_context>
chip_gen: v7x
topology: tpu7x:2x2x1
jax: 0.10.0
libtpu: 0.0.40
codegen_flags: <defaults>
</compile_context>

<pallas_src>
import functools
import math

import jax
import jax.numpy as jnp
from jax.experimental import pallas as pl
from jax.experimental.pallas import tpu as pltpu


def _pick_block(dim, preferred, align):
    """Largest multiple of `align` dividing `dim` that is <= `preferred`.
    Returns `dim` if it already fits; None if no aligned divisor exists."""
    if dim <= preferred:
        return dim
    cand = (preferred // align) * align
    while cand >= align:
        if dim % cand == 0:
            return cand
        cand -= align
    return None


def _vmem_budgets():
    """(input-tile budget, vmem_limit cap), generation-aware."""
    try:
        cap = pltpu.get_tpu_info().vmem_capacity_bytes
    except Exception:
        cap = 64 << 20  # conservative fallback
    if cap >= (96 << 20):            # v5e / v6e class: 128 MiB physical VMEM
        return 20 << 20, 96 << 20
    return 10 << 20, 48 << 20        # v7x class: 64 MiB per TensorCore


def _mean_dim1_kernel(x_ref, o_ref, acc_ref, *, inv_s):
    # x_ref:   (TB, TS, H) input tile
    # o_ref:   (TB, H)     output tile (resident across the reduction axis)
    # acc_ref: (TB, H)     f32 scratch accumulator
    k = pl.program_id(1)

    @pl.when(k == 0)
    def _init():
        acc_ref[...] = jnp.zeros_like(acc_ref)

    acc_ref[...] += jnp.sum(x_ref[...].astype(jnp.float32), axis=1)

    @pl.when(k == pl.num_programs(1) - 1)
    def _finalize():
        # Divide by the FULL (original) sequence length, cast once.
        o_ref[...] = (acc_ref[...] * inv_s).astype(o_ref.dtype)


def embedding_average(x):
    """Pallas equivalent of EmbeddingAverage(dim=1): mean over axis 1.

    x: (B, S, H) -> (B, H)
    """
    # TODO(synk): general `dim`/ndim support would moveaxis+reshape to (B,S,H) here.
    B, S, H = x.shape
    orig_dtype = x.dtype
    inv_s = 1.0 / S

    # --- lane densification: fold g sequence rows into the lane dim ---------
    fold = 1
    if H % 128 != 0:
        g = 128 // math.gcd(H, 128)
        if g > 1 and S % g == 0:
            fold = g
            x = x.reshape(B, S // g, g * H)
    _, S_eff, H_eff = x.shape

    itemsize = x.dtype.itemsize
    needs_upcast = x.dtype != jnp.float32
    in_budget, vmem_cap_limit = _vmem_budgets()

    def _row_cost(tb):
        # VMEM bytes per sequence row of an input tile at batch-tile `tb`:
        # double-buffered native-dtype rows + one f32 upcast row if needed.
        return tb * H_eff * (2 * itemsize + (4 if needs_upcast else 0))

    # --- batch tile: modest, sublane-aligned -------------------------------
    if B % 8 == 0:
        TB = 8
    elif _row_cost(B) * 8 + B * H_eff * 4 <= in_budget:
        TB = B                      # small unaligned batch: full-dim block, no copy
    else:
        pad_b = (-B) % 8
        x = jnp.pad(x, ((0, pad_b), (0, 0), (0, 0)))
        TB = 8
    B_pad = x.shape[0]

    # --- sequence tile: grow to fill the input budget (contiguous DMA) ------
    max_ts = max(8, in_budget // max(1, _row_cost(TB)))
    if S_eff <= max_ts:
        TS = S_eff                  # whole sequence in one step (full-dim block)
    else:
        pad_s = (-S_eff) % 8
        if pad_s:
            x = jnp.pad(x, ((0, 0), (0, pad_s), (0, 0)))
        TS = _pick_block(x.shape[1], max_ts, 8) or 8
    S_pad = x.shape[1]

    # --- if the sequence fits one step, grow TB (keep grid[0] >= 2 for v7x) -
    if TS == S_pad and B_pad % 8 == 0 and B_pad > TB:
        min_blocks = 2 if B_pad >= 16 else 1
        cand = TB * 2
        while (cand <= 1024 and B_pad % cand == 0
               and B_pad // cand >= min_blocks
               and _row_cost(cand) * TS + cand * H_eff * 12 <= in_budget):
            TB = cand
            cand *= 2

    grid = (B_pad // TB, S_pad // TS)

    # --- VMEM accounting (inputs, f32 upcast, accumulator, outputs, slack) --
    out_dtype = jnp.float32 if fold > 1 else orig_dtype
    in_tile_b = TB * TS * H_eff * itemsize
    upcast_b = TB * TS * H_eff * 4 if needs_upcast else 0
    acc_b = TB * H_eff * 4
    out_tile_b = TB * H_eff * jnp.dtype(out_dtype).itemsize

    def _total(nbuf):
        return nbuf * in_tile_b + upcast_b + acc_b + 2 * out_tile_b + (4 << 20)

    nbuf = 3 if (grid[1] >= 4 and _total(3) <= vmem_cap_limit) else 2
    vmem_limit = int(min(max(_total(nbuf), 32 << 20), vmem_cap_limit))

    in_index_map = lambda b, k: (b, k, 0)
    if nbuf == 3:
        try:
            in_spec = pl.BlockSpec((TB, TS, H_eff), in_index_map,
                                   pipeline_mode=pl.Buffered(3))
        except TypeError:
            in_spec = pl.BlockSpec((TB, TS, H_eff), in_index_map)
    else:
        in_spec = pl.BlockSpec((TB, TS, H_eff), in_index_map)

    kernel = functools.partial(_mean_dim1_kernel, inv_s=inv_s)

    y = pl.pallas_call(
        kernel,
        out_shape=jax.ShapeDtypeStruct((B_pad, H_eff), out_dtype),
        grid=grid,
        in_specs=[in_spec],
        out_specs=pl.BlockSpec((TB, H_eff), lambda b, k: (b, 0)),
        scratch_shapes=[pltpu.VMEM((TB, H_eff), jnp.float32)],
        compiler_params=pltpu.CompilerParams(
            dimension_semantics=("parallel", "arbitrary"),
            vmem_limit_bytes=vmem_limit,
        ),
    )(x)

    if B_pad != B:
        y = y[:B]
    if fold > 1:
        # Fold the g lane groups back to H and cast once.
        y = y.reshape(B, fold, H).sum(axis=1).astype(orig_dtype)
    return y


if __name__ == "__main__":
    key = jax.random.PRNGKey(0)

    # Primary shape implied by the module: batch=2, seq=8, hidden=32.
    B, S, H = 2, 8, 32
    x = jax.random.normal(key, (B, S, H), dtype=jnp.float32)
    out = jax.block_until_ready(embedding_average(x))
    ref = jnp.mean(x, axis=1)
    assert out.shape == (B, H), out.shape
    assert jnp.allclose(out, ref, atol=1e-5, rtol=1e-5), \
        float(jnp.max(jnp.abs(out - ref)))

    # Second small shape: lane-aligned H, sublane-aligned B (no fold path).
    B2, S2, H2 = 16, 64, 128
    x2 = jax.random.normal(jax.random.PRNGKey(1), (B2, S2, H2), dtype=jnp.float32)
    out2 = jax.block_until_ready(embedding_average(x2))
    ref2 = jnp.mean(x2, axis=1)
    assert out2.shape == (B2, H2), out2.shape
    assert jnp.allclose(out2, ref2, atol=1e-5, rtol=1e-5), \
        float(jnp.max(jnp.abs(out2 - ref2)))

    print("KERNEL_OK")
</pallas_src>

<mosaic_0001>
module attributes {stable_mosaic.version = 11 : i64} {
  func.func @_mean_dim1_kernel(%arg0: i32, %arg1: i32, %arg2: memref<2x2x128xf32, #tpu.memory_space<vmem>>, %arg3: memref<2x128xf32, #tpu.memory_space<vmem>>, %arg4: memref<2x128xf32, #tpu.memory_space<vmem>>) attributes {dimension_semantics = [#tpu.dimension_semantics<parallel>, #tpu.dimension_semantics<arbitrary>], iteration_bounds = array<i64: 1, 1>, scalar_prefetch = 0 : i64, scratch_operands = 1 : i64, tpu.core_type = #tpu.core_type<tc>, window_params = [{transform_indices = @transform_0, window_bounds = array<i64: 2, 2, 128>}, {transform_indices = @transform_1, window_bounds = array<i64: 2, 128>}]} {
    %c0_i32 = arith.constant 0 : i32
    %0 = arith.cmpi eq, %arg1, %c0_i32 : i32
    %1 = arith.extui %0 : i1 to i32
    %c0_i32_0 = arith.constant 0 : i32
    %2 = arith.cmpi ne, %1, %c0_i32_0 : i32
    scf.if %2 {
      %cst_9 = arith.constant 0.000000e+00 : f32
      %11 = vector.broadcast %cst_9 : f32 to vector<2x128xf32>
      %c0_10 = arith.constant 0 : index
      %c0_11 = arith.constant 0 : index
      %12 = vector.load %arg4[%c0_10, %c0_11] : memref<2x128xf32, #tpu.memory_space<vmem>>, vector<2x128xf32>
      tpu.vector_store %arg4[%c0_10, %c0_11], %11 {strides = array<i32>} : memref<2x128xf32, #tpu.memory_space<vmem>>, vector<2x128xf32>,
    } else {
    }
    %c0 = arith.constant 0 : index
    %c0_1 = arith.constant 0 : index
    %3 = vector.load %arg4[%c0, %c0_1] : memref<2x128xf32, #tpu.memory_space<vmem>>, vector<2x128xf32>
    %c0_2 = arith.constant 0 : index
    %c0_3 = arith.constant 0 : index
    %c0_4 = arith.constant 0 : index
    %4 = vector.load %arg2[%c0_2, %c0_3, %c0_4] : memref<2x2x128xf32, #tpu.memory_space<vmem>>, vector<2x2x128xf32>
    %cst = arith.constant dense<0.000000e+00> : vector<2x128xf32>
    %5 = vector.multi_reduction <add>, %4, %cst [1] : vector<2x2x128xf32> to vector<2x128xf32>
    %6 = arith.addf %3, %5 : vector<2x128xf32>
    %c0_5 = arith.constant 0 : index
    %c0_6 = arith.constant 0 : index
    %7 = vector.load %arg4[%c0_5, %c0_6] : memref<2x128xf32, #tpu.memory_space<vmem>>, vector<2x128xf32>
    tpu.vector_store %arg4[%c0_5, %c0_6], %6 {strides = array<i32>} : memref<2x128xf32, #tpu.memory_space<vmem>>, vector<2x128xf32>,
    %c0_i32_7 = arith.constant 0 : i32
    %8 = arith.cmpi eq, %arg1, %c0_i32_7 : i32
    %9 = arith.extui %8 : i1 to i32
    %c0_i32_8 = arith.constant 0 : i32
    %10 = arith.cmpi ne, %9, %c0_i32_8 : i32
    scf.if %10 {
      %c0_9 = arith.constant 0 : index
      %c0_10 = arith.constant 0 : index
      %11 = vector.load %arg4[%c0_9, %c0_10] : memref<2x128xf32, #tpu.memory_space<vmem>>, vector<2x128xf32>
      %cst_11 = arith.constant 1.250000e-01 : f32
      %12 = vector.broadcast %cst_11 : f32 to vector<2x128xf32>
      %13 = arith.mulf %11, %12 : vector<2x128xf32>
      %c0_12 = arith.constant 0 : index
      %c0_13 = arith.constant 0 : index
      %14 = vector.load %arg3[%c0_12, %c0_13] : memref<2x128xf32, #tpu.memory_space<vmem>>, vector<2x128xf32>
      tpu.vector_store %arg3[%c0_12, %c0_13], %13 {strides = array<i32>} : memref<2x128xf32, #tpu.memory_space<vmem>>, vector<2x128xf32>,
    } else {
    }
    return
  }
  func.func @transform_0(%arg0: i32, %arg1: i32) -> (i32, i32, i32) {
    %c0_i32 = arith.constant 0 : i32
    %c0_i32_0 = arith.constant 0 : i32
    return %arg0, %arg1, %c0_i32 : i32, i32, i32
  }
  func.func @transform_1(%arg0: i32, %arg1: i32) -> (i32, i32) {
    %c0_i32 = arith.constant 0 : i32
    %c0_i32_0 = arith.constant 0 : i32
    return %arg0, %c0_i32 : i32, i32
  }
}

</mosaic_0001>

<llo_original>
// kernel: tpu_custom_call.1
$region0: #{tpu_custom_call.1}
  #allocation0 [shape = 'u32[]', space=smem, size = 0x4, offset = 0x4, fixed_abs, tag = 'smem constant byte address 0x4 - core index']
  #allocation1 [shape = 'u32[144,128]{1,0:T(1,128)}', space=vmem, size = 0x12000, scoped, tag = 'internal scratch']
  #allocation2 [shape = 'f32[2,128]{1,0:T(2,128)}', space=vmem, size = 0x400, scoped, tag = 'scratch operand']
  %s0 = inlined_call_operand.hbm [shape: f32[2,2,128], index: 0, kind: input, shape index: {}]
  %s1 = inlined_call_operand.hbm [shape: f32[2,128], index: 1, kind: output, shape index: {}]
  %s2 = sld [smem:[#allocation0]]
  $region26: #{tpu_custom_call.1} parent=0
    _
  %s4 = ssub.s32 1, %s2
  %s5 = scalar_select 0, %s4, %s2
  $region1: #{tpu_custom_call.1} parent=0
    #allocation3 [shape = 'u8[2048]{0}', space=vmem, size = 0x800, scoped, tag = 'input window, operand 0, single buffered']
    #allocation4 [shape = 's32[1]{0}', space=sflag, size = 0x4, scoped, tag = 'scoped memory for tpu_custom_call.1']
    #allocation5 [shape = 's32[1]{0}', space=sflag, size = 0x4, scoped, tag = 'scoped memory for tpu_custom_call.1']
    #allocation6 [shape = 'u8[1024]{0}', space=vmem, size = 0x400, scoped, tag = 'output window, operand 0, single buffered']
    %6 = vsyncpa [#allocation4], 0
    %7 = vsyncpa [#allocation5], 0
    // Predicated region
    $region2: #{tpu_custom_call.1} parent=1 // pred_check
      _
    $region3: #{tpu_custom_call.1} parent=1 // pred_check_branch
      %9 = sbr.rel (0) target = $region5
    $region4: #{tpu_custom_call.1} parent=1 // pred_region
      %s11 = ssub.s32 64, 64
      %12 = vsyncadd [#allocation4], %s11
      %s13 = sshll.u32 [#allocation3], 4
      %s14 = int_to_ptr.vmem [resolvable:$true] %s13
      %19 = dma.hbm_to_vmem [thread:$0]  %s0, 64, %s14, [#allocation4], 32, 32, 2
    $region5: #{tpu_custom_call.1} parent=1 // pred_fallthru
      _
    // Predicated region
    $region6: #{tpu_custom_call.1} parent=1 // pred_check
      _
    $region7: #{tpu_custom_call.1} parent=1 // pred_check_branch
      %21 = sbr.rel (0) target = $region9
    $region8: #{tpu_custom_call.1} parent=1 // pred_region
      %22 = dma.done [#allocation4], 64
    $region9: #{tpu_custom_call.1} parent=1 // pred_fallthru
      _
    %p23 = scmp.eq.s32.totalorder 0, 0
    // Predicated region
    $region10: #{tpu_custom_call.1} parent=1 // pred_check
      %p24 = pneg %p23
    $region11: #{tpu_custom_call.1} parent=1 // pred_check_branch
      %26 = sbr.rel (%p24) target = $region13
    $region12: #{tpu_custom_call.1} parent=1 // pred_region
      %27 = vst [vmem:[#allocation2] sm:$0x3] 0.0
    $region13: #{tpu_custom_call.1} parent=1 // pred_fallthru
      _
    %v28 = vld [vmem:[#allocation2] sm:$0x3]
    %v29 = vld [vmem:[#allocation3] sm:$0x3]
    %v30 = vld [vmem:[#allocation3 + $0x2] sm:$0x3]
    %vm31 = vcmask 1041408
    %v32 = vsel %vm31, %v29, 0.0
    %v33 = vrot.slane %v32, 4
    %v34 = vadd.f32 %v32, %v33
    %v35 = vrot.slane %v34, 2
    %v36 = vadd.f32 %v34, %v35
    %v37 = vrot.slane %v36, 1
    %v38 = vadd.f32 %v36, %v37
    %v39 = vsel %vm31, %v30, 0.0
    %v40 = vrot.slane %v39, 4
    %v41 = vadd.f32 %v39, %v40
    %v42 = vrot.slane %v41, 2
    %v43 = vadd.f32 %v41, %v42
    %v44 = vrot.slane %v43, 1
    %v45 = vadd.f32 %v43, %v44
    %vm48 = vcmask 1041409
    %v49 = vsel %vm48, %v45, %v38
    %v51 = vadd.f32 %v28, %v49
    %52 = vst [vmem:[#allocation2] sm:$0x3] %v51
    // Predicated region
    $region14: #{tpu_custom_call.1} parent=1 // pred_check
      %p53 = pneg %p23
    $region15: #{tpu_custom_call.1} parent=1 // pred_check_branch
      %55 = sbr.rel (%p53) target = $region17
    $region16: #{tpu_custom_call.1} parent=1 // pred_region
      %v56 = vld [vmem:[#allocation2] sm:$0x3]
      %v57 = vmul.f32 %v56, 0.125
      %58 = vst [vmem:[#allocation6] sm:$0x3] %v57
    $region17: #{tpu_custom_call.1} parent=1 // pred_fallthru
      _
    // Predicated region
    $region18: #{tpu_custom_call.1} parent=1 // pred_check
      _
    $region19: #{tpu_custom_call.1} parent=1 // pred_check_branch
      %60 = sbr.rel (0) target = $region21
    $region20: #{tpu_custom_call.1} parent=1 // pred_region
      %s62 = ssub.s32 32, 32
      %63 = vsyncadd [#allocation5], %s62
      %s65 = sshll.u32 [#allocation6], 4
      %s66 = int_to_ptr.vmem [resolvable:$true] %s65
      %68 = dma.vmem_to_hbm [thread:$0]  %s66, 32, %s1, [#allocation5]
    $region21: #{tpu_custom_call.1} parent=1 // pred_fallthru
      _
    // Predicated region
    $region22: #{tpu_custom_call.1} parent=1 // pred_check
      _
    $region23: #{tpu_custom_call.1} parent=1 // pred_check_branch
      %70 = sbr.rel (0) target = $region25
    $region24: #{tpu_custom_call.1} parent=1 // pred_region
      %71 = dma.done [#allocation5], 32
    $region25: #{tpu_custom_call.1} parent=1 // pred_fallthru
      _
    %72 = vsyncpa [#allocation4], 1
    %73 = vsyncpa [#allocation5], 1

</llo_original>
